<compile_context>
chip_gen: v5e
topology: v5e:2x2
jax: 0.10.0
libtpu: 0.0.40
codegen_flags: <defaults>
</compile_context>

<pallas_src>
import functools

import jax
import jax.numpy as jnp
from jax.experimental import pallas as pl
from jax.experimental.pallas import tpu as pltpu


def _graph_attention_kernel(idx_ref, pc_ref, pn_ref, feat_ref, selc_ref,
                            selct_ref, out_ref, *, nc, n_chunks):
    """Fused gather + folded-BN + LeakyReLU + softmax(K) + weighted sum.

    idx_ref   : (1, 1, TN*K) int32  neighbor indices, node-major (K fastest)
    pc_ref    : (1, D, TN)   f32    centre projection (+ folded BN bias)
    pn_ref    : (1, D, Nc)   f32    neighbor-delta projection, full batch row
    feat_ref  : (1, D, TN*K) f32    feature tile in its native layout
    selc_ref  : (TN, TN*K)   f32    constant: sel_c[n, r]  = (r // K == n)
    selct_ref : (TN*K, TN)   f32    constant: sel_cT[r, n] = (r // K == n)
    out_ref   : (1, D, TN)   f32    output tile, already in final [B,D,N] layout
    """
    f32 = jnp.float32
    d = pc_ref.shape[1]
    tn = pc_ref.shape[2]
    tnk = feat_ref.shape[2]
    k = tnk // tn

    idx = idx_ref[0]                 # (1, tnk) int32
    sel_c = selc_ref[...]            # (tn, tnk) — DMA'd once, stays resident
    sel_ct = selct_ref[...]          # (tnk, tn)

    # ---- neighbour gather: one-hot matmul on the MXU, chunked over nodes --
    iota = jax.lax.broadcasted_iota(jnp.int32, (nc, tnk), 0)
    if n_chunks == 1:
        sel_n = (iota == idx).astype(f32)                         # (nc, tnk)
        e = jnp.dot(pn_ref[0], sel_n, preferred_element_type=f32)  # (d, tnk)
    else:
        def body(c, acc):
            m0 = pl.multiple_of(c * nc, nc)
            sel_n = ((iota + m0) == idx).astype(f32)              # (nc, tnk)
            pn_c = pn_ref[:, :, pl.ds(m0, nc)][0]                 # (d, nc)
            return acc + jnp.dot(pn_c, sel_n, preferred_element_type=f32)
        e = jax.lax.fori_loop(0, n_chunks, body,
                              jnp.zeros((d, tnk), f32))           # (d, tnk)

    # ---- add centre projection, replicated over each node's K slots ------
    e = e + jnp.dot(pc_ref[0], sel_c, preferred_element_type=f32)  # (d, tnk)

    # ---- LeakyReLU(0.2); BatchNorm is already folded into pc/pn ----------
    e = jnp.where(e >= 0.0, e, 0.2 * e)

    # ---- softmax over each node's K neighbors (K adjacent lanes) ---------
    # Subtract the PER-GROUP mean (exact shift for softmax): each group is
    # centred on its own statistics, so no cross-group underflow, and
    # denom >= 1 (the group max is >= the group mean).
    gmean = jnp.dot(e, sel_ct, preferred_element_type=f32) * (1.0 / k)  # (d, tn)
    e = e - jnp.dot(gmean, sel_c, preferred_element_type=f32)           # (d, tnk)
    p = jnp.exp(e)                                                      # (d, tnk)

    # ---- fused K-group reductions: one (2D, tnk) @ (tnk, tn) MXU matmul --
    pf = p * feat_ref[0]                                                # (d, tnk)
    red = jnp.dot(jnp.concatenate([p, pf], axis=0), sel_ct,
                  preferred_element_type=f32)                           # (2d, tn)
    denom = red[:d]
    num = red[d:]
    out = num * pl.reciprocal(denom, approx=True)                       # (d, tn)
    out_ref[...] = out[None].astype(out_ref.dtype)


def _vmem_capacity_bytes():
    """Per-TensorCore VMEM capacity; conservative fallback if unavailable."""
    get_info = getattr(pltpu, "get_tpu_info", None)
    if get_info is not None:
        try:
            cap = getattr(get_info(), "vmem_capacity_bytes", None)
            if cap:
                return int(cap)
        except Exception:
            pass
    return 64 * 2**20      # v7x per-core VMEM (the tightest generation)


def _budget_bytes(tn, D, K, n_pn, nc):
    """Rough per-grid-step VMEM: double-buffered tiles + in-kernel temps."""
    tnk = tn * K
    per_buf = 4 * (tnk + D * tn + D * n_pn + D * tnk + D * tn)   # idx/pc/pn/feat/out
    per_buf += 4 * 2 * tn * tnk                                  # sel_c + sel_cT
    temps = 4 * (nc * tnk + 8 * D * tnk + 6 * D * tn)            # sel_n chunk, e/p/pf/stack
    return 2 * per_buf + temps


@functools.partial(jax.jit, static_argnames=("tn",))
def graph_attention_forward(graph_index, x, feature, w, gamma, beta,
                            running_mean, running_var, tn=None, eps=1e-5):
    B, C, N = x.shape
    D = feature.shape[1]
    K = graph_index.shape[2]

    # PyTorch does x.view(B, N, C): a row-major reinterpret, NOT a transpose.
    xr = jnp.reshape(x, (B, N, C))

    # Fold eval-mode BatchNorm into the 1x1-conv weight / bias.
    scale = gamma / jnp.sqrt(running_var + eps)                 # [D]
    bias = beta - running_mean * scale                          # [D]
    w1 = w[:, :C] * scale[:, None]                              # [D, C] centre
    w2 = w[:, C:] * scale[:, None]                              # [D, C] neighbor
    # e = (centre - nb) @ W1^T + nb @ W2^T = centre @ W1^T + nb @ (W2 - W1)^T
    pc_t = jnp.einsum('bnc,dc->bdn', xr, w1) + bias[None, :, None]   # [B, D, N]
    pn_t = jnp.einsum('bnc,dc->bdn', xr, w2 - w1)                    # [B, D, N]

    # Native-layout (free) reshapes: no HBM transpose of `feature`.
    feat2 = jnp.reshape(feature, (B, D, N * K))
    idx3 = jnp.reshape(graph_index.astype(jnp.int32), (B, 1, N * K))

    # ---- gather chunking over the node axis (bounds sel_n to nc*tn*K) ----
    nc = N if N <= 512 else 512
    n_chunks = -(-N // nc)
    Nc = n_chunks * nc
    if Nc != N:
        pn_t = jnp.pad(pn_t, ((0, 0), (0, 0), (0, Nc - N)))

    # ---- generation-aware node-tile size and scoped VMEM limit -----------
    cap = _vmem_capacity_bytes()
    if tn is None:
        cands = ([N] if N <= 1024 else []) + \
                [t for t in (1024, 512, 384, 256, 128) if t < N]
        tn = cands[-1]
        for t in cands:
            if _budget_bytes(t, D, K, Nc, nc) <= 0.70 * cap:
                tn = t
                break
        # Keep >= 2 grid steps so both v7x TensorCores get work.
        if B * (-(-N // tn)) < 2 and N >= 256:
            tn = max(128, (N // 2) // 128 * 128)
    n_blk = -(-N // tn)
    Np = n_blk * tn
    if Np != N:
        pc_t = jnp.pad(pc_t, ((0, 0), (0, 0), (0, Np - N)))
        feat2 = jnp.pad(feat2, ((0, 0), (0, 0), (0, (Np - N) * K)))
        idx3 = jnp.pad(idx3, ((0, 0), (0, 0), (0, (Np - N) * K)))

    # ---- constant selectors: built once, resident in VMEM ----------------
    tnk = tn * K
    grp = jnp.arange(tnk, dtype=jnp.int32) // K                  # (tnk,)
    node = jnp.arange(tn, dtype=jnp.int32)                       # (tn,)
    sel_c = (node[:, None] == grp[None, :]).astype(jnp.float32)  # (tn, tnk)
    sel_ct = (grp[:, None] == node[None, :]).astype(jnp.float32)  # (tnk, tn)

    budget = _budget_bytes(tn, D, K, Nc, nc)
    vmem_limit = int(min(0.92 * cap, max(32 * 2**20, budget + 8 * 2**20)))

    kernel = functools.partial(_graph_attention_kernel, nc=nc,
                               n_chunks=n_chunks)
    out = pl.pallas_call(
        kernel,
        out_shape=jax.ShapeDtypeStruct((B, D, Np), jnp.float32),
        grid_spec=pltpu.PrefetchScalarGridSpec(
            num_scalar_prefetch=0,
            grid=(B, n_blk),
            in_specs=[
                pl.BlockSpec((1, 1, tnk), lambda b, i: (b, 0, i)),
                pl.BlockSpec((1, D, tn), lambda b, i: (b, 0, i)),
                pl.BlockSpec((1, D, Nc), lambda b, i: (b, 0, 0)),
                pl.BlockSpec((1, D, tnk), lambda b, i: (b, 0, i)),
                pl.BlockSpec((tn, tnk), lambda b, i: (0, 0)),
                pl.BlockSpec((tnk, tn), lambda b, i: (0, 0)),
            ],
            out_specs=pl.BlockSpec((1, D, tn), lambda b, i: (b, 0, i)),
        ),
        compiler_params=pltpu.CompilerParams(
            dimension_semantics=("parallel", "parallel"),
            vmem_limit_bytes=vmem_limit),
    )(idx3, pc_t, pn_t, feat2, sel_c, sel_ct)

    return out[:, :, :N] if Np != N else out


def _ref_forward(graph_index, x, feature, w, gamma, beta, running_mean,
                 running_var, eps=1e-5):
    """Pure-JAX reference mirroring the PyTorch forward (eval-mode BN)."""
    B, C, N = x.shape
    xr = jnp.reshape(x, (B, N, C))
    neighbor = jax.vmap(lambda pts, idx: pts[idx])(xr, graph_index)
    centre = jnp.broadcast_to(xr[:, :, None, :], neighbor.shape)
    delta = jnp.concatenate([centre - neighbor, neighbor], axis=3)
    e = jnp.einsum('bnkc,dc->bnkd', delta, w)
    e = (e - running_mean) / jnp.sqrt(running_var + eps) * gamma + beta
    e = jnp.where(e >= 0, e, 0.2 * e)
    attn = jax.nn.softmax(e, axis=2)
    fperm = jnp.transpose(feature, (0, 2, 3, 1))
    gf = jnp.sum(attn * fperm, axis=2)
    return jnp.transpose(gf, (0, 2, 1))


if __name__ == "__main__":
    B, C, N, K, D = 2, 4, 16, 8, 16   # feature_dim=C, out_dim=D

    key = jax.random.PRNGKey(0)
    k_idx, k_x, k_feat, k_w, k_g, k_b, k_m, k_v = jax.random.split(key, 8)

    graph_index = jax.random.randint(k_idx, (B, N, K), 0, N, dtype=jnp.int32)
    x = jax.random.normal(k_x, (B, C, N), dtype=jnp.float32)
    feature = jax.random.normal(k_feat, (B, D, N, K), dtype=jnp.float32)

    # Conv2d(2C -> D, 1x1, bias=False) + BatchNorm2d(D) parameters.
    w = 0.1 * jax.random.normal(k_w, (D, 2 * C), dtype=jnp.float32)
    gamma = 1.0 + 0.1 * jax.random.normal(k_g, (D,), dtype=jnp.float32)
    beta = 0.1 * jax.random.normal(k_b, (D,), dtype=jnp.float32)
    running_mean = 0.1 * jax.random.normal(k_m, (D,), dtype=jnp.float32)
    running_var = jnp.abs(1.0 + 0.1 * jax.random.normal(k_v, (D,),
                                                        dtype=jnp.float32))

    out = graph_attention_forward(graph_index, x, feature, w, gamma, beta,
                                  running_mean, running_var)
    out = jax.block_until_ready(out)

    ref = _ref_forward(graph_index, x, feature, w, gamma, beta, running_mean,
                       running_var)
    assert out.shape == (B, D, N)
    # Tolerance accounts for pl.reciprocal(approx=True) on the EUP (~1e-4 rel).
    assert jnp.allclose(out, ref, atol=2e-3, rtol=2e-3), "mismatch vs reference"

    print("KERNEL_OK")
</pallas_src>

<mosaic_0001>
module attributes {stable_mosaic.version = 11 : i64} {
  func.func @_graph_attention_kernel(%arg0: i32, %arg1: i32, %arg2: memref<1x1x128xi32, #tpu.memory_space<vmem>>, %arg3: memref<1x16x16xf32, #tpu.memory_space<vmem>>, %arg4: memref<1x16x16xf32, #tpu.memory_space<vmem>>, %arg5: memref<1x16x128xf32, #tpu.memory_space<vmem>>, %arg6: memref<16x128xf32, #tpu.memory_space<vmem>>, %arg7: memref<128x16xf32, #tpu.memory_space<vmem>>, %arg8: memref<1x16x16xf32, #tpu.memory_space<vmem>>) attributes {dimension_semantics = [#tpu.dimension_semantics<parallel>, #tpu.dimension_semantics<parallel>], iteration_bounds = array<i64: 2, 1>, scalar_prefetch = 0 : i64, scratch_operands = 0 : i64, tpu.core_type = #tpu.core_type<tc>, window_params = [{transform_indices = @transform_0, window_bounds = array<i64: 1, 1, 128>}, {transform_indices = @transform_1, window_bounds = array<i64: 1, 16, 16>}, {transform_indices = @transform_2, window_bounds = array<i64: 1, 16, 16>}, {transform_indices = @transform_3, window_bounds = array<i64: 1, 16, 128>}, {pipeline_mode = #tpu.pipeline_mode<synchronous>, transform_indices = @transform_4, window_bounds = array<i64: 16, 128>}, {pipeline_mode = #tpu.pipeline_mode<synchronous>, transform_indices = @transform_5, window_bounds = array<i64: 128, 16>}, {transform_indices = @transform_6, window_bounds = array<i64: 1, 16, 16>}]} {
    %c0 = arith.constant 0 : index
    %c0_0 = arith.constant 0 : index
    %c0_1 = arith.constant 0 : index
    %0 = vector.load %arg2[%c0, %c0_0, %c0_1] : memref<1x1x128xi32, #tpu.memory_space<vmem>>, vector<1x1x128xi32>
    %1 = vector.shape_cast %0 : vector<1x1x128xi32> to vector<1x128xi32>
    %c0_2 = arith.constant 0 : index
    %c0_3 = arith.constant 0 : index
    %2 = vector.load %arg6[%c0_2, %c0_3] : memref<16x128xf32, #tpu.memory_space<vmem>>, vector<16x128xf32>
    %c0_4 = arith.constant 0 : index
    %c0_5 = arith.constant 0 : index
    %3 = vector.load %arg7[%c0_4, %c0_5] : memref<128x16xf32, #tpu.memory_space<vmem>>, vector<128x16xf32>
    %4 = tpu.iota {dimensions = array<i32: 0>} : vector<16x128xi32>
    %5 = vector.broadcast %1 : vector<1x128xi32> to vector<16x128xi32>
    %6 = arith.cmpi eq, %4, %5 : vector<16x128xi32>
    %7 = arith.extui %6 : vector<16x128xi1> to vector<16x128xi32>
    %8 = arith.sitofp %7 : vector<16x128xi32> to vector<16x128xf32>
    %c0_6 = arith.constant 0 : index
    %c0_7 = arith.constant 0 : index
    %c0_8 = arith.constant 0 : index
    %9 = vector.load %arg4[%c0_6, %c0_7, %c0_8] : memref<1x16x16xf32, #tpu.memory_space<vmem>>, vector<1x16x16xf32>
    %10 = vector.shape_cast %9 : vector<1x16x16xf32> to vector<16x16xf32>
    %cst = arith.constant dense<0.000000e+00> : vector<16x128xf32>
    %11 = tpu.matmul %10, %8, %cst {dimension_numbers = #tpu.dot_dimension_numbers<[1], [0], [0], [1], [0, 0, 1, 1], [], []>} : vector<16x16xf32>, vector<16x128xf32>, vector<16x128xf32> -> vector<16x128xf32>
    %c0_9 = arith.constant 0 : index
    %c0_10 = arith.constant 0 : index
    %c0_11 = arith.constant 0 : index
    %12 = vector.load %arg3[%c0_9, %c0_10, %c0_11] : memref<1x16x16xf32, #tpu.memory_space<vmem>>, vector<1x16x16xf32>
    %13 = vector.shape_cast %12 : vector<1x16x16xf32> to vector<16x16xf32>
    %cst_12 = arith.constant dense<0.000000e+00> : vector<16x128xf32>
    %14 = tpu.matmul %13, %2, %cst_12 {dimension_numbers = #tpu.dot_dimension_numbers<[1], [0], [0], [1], [0, 0, 1, 1], [], []>} : vector<16x16xf32>, vector<16x128xf32>, vector<16x128xf32> -> vector<16x128xf32>
    %15 = arith.addf %11, %14 : vector<16x128xf32>
    %cst_13 = arith.constant 0.000000e+00 : f32
    %16 = vector.broadcast %cst_13 : f32 to vector<16x128xf32>
    %17 = arith.cmpf oge, %15, %16 : vector<16x128xf32>
    %cst_14 = arith.constant 2.000000e-01 : f32
    %18 = vector.broadcast %cst_14 : f32 to vector<16x128xf32>
    %19 = arith.mulf %18, %15 : vector<16x128xf32>
    %20 = arith.select %17, %15, %19 : vector<16x128xi1>, vector<16x128xf32>
    %cst_15 = arith.constant dense<0.000000e+00> : vector<16x16xf32>
    %21 = tpu.matmul %20, %3, %cst_15 {dimension_numbers = #tpu.dot_dimension_numbers<[1], [0], [0], [1], [0, 0, 1, 1], [], []>} : vector<16x128xf32>, vector<128x16xf32>, vector<16x16xf32> -> vector<16x16xf32>
    %cst_16 = arith.constant 1.250000e-01 : f32
    %22 = vector.broadcast %cst_16 : f32 to vector<16x16xf32>
    %23 = arith.mulf %21, %22 : vector<16x16xf32>
    %cst_17 = arith.constant dense<0.000000e+00> : vector<16x128xf32>
    %24 = tpu.matmul %23, %2, %cst_17 {dimension_numbers = #tpu.dot_dimension_numbers<[1], [0], [0], [1], [0, 0, 1, 1], [], []>} : vector<16x16xf32>, vector<16x128xf32>, vector<16x128xf32> -> vector<16x128xf32>
    %25 = arith.subf %20, %24 : vector<16x128xf32>
    %26 = math.exp %25 : vector<16x128xf32>
    %c0_18 = arith.constant 0 : index
    %c0_19 = arith.constant 0 : index
    %c0_20 = arith.constant 0 : index
    %27 = vector.load %arg5[%c0_18, %c0_19, %c0_20] : memref<1x16x128xf32, #tpu.memory_space<vmem>>, vector<1x16x128xf32>
    %28 = vector.shape_cast %27 : vector<1x16x128xf32> to vector<16x128xf32>
    %29 = arith.mulf %26, %28 : vector<16x128xf32>
    %30 = tpu.concatenate %26, %29 in 0 : vector<16x128xf32>, vector<16x128xf32> -> vector<32x128xf32>
    %cst_21 = arith.constant dense<0.000000e+00> : vector<32x16xf32>
    %31 = tpu.matmul %30, %3, %cst_21 {dimension_numbers = #tpu.dot_dimension_numbers<[1], [0], [0], [1], [0, 0, 1, 1], [], []>} : vector<32x128xf32>, vector<128x16xf32>, vector<32x16xf32> -> vector<32x16xf32>
    %32 = vector.extract_strided_slice %31 {offsets = [0, 0], sizes = [16, 16], strides = [1, 1]} : vector<32x16xf32> to vector<16x16xf32>
    %33 = vector.extract_strided_slice %31 {offsets = [16, 0], sizes = [16, 16], strides = [1, 1]} : vector<32x16xf32> to vector<16x16xf32>
    %34 = tpu.reciprocal %32 {approx = true} : vector<16x16xf32> -> vector<16x16xf32>
    %35 = arith.mulf %33, %34 : vector<16x16xf32>
    %36 = vector.shape_cast %35 : vector<16x16xf32> to vector<1x16x16xf32>
    %c0_22 = arith.constant 0 : index
    %c0_23 = arith.constant 0 : index
    %c0_24 = arith.constant 0 : index
    %37 = vector.load %arg8[%c0_22, %c0_23, %c0_24] : memref<1x16x16xf32, #tpu.memory_space<vmem>>, vector<1x16x16xf32>
    tpu.vector_store %arg8[%c0_22, %c0_23, %c0_24], %36 {strides = array<i32>} : memref<1x16x16xf32, #tpu.memory_space<vmem>>, vector<1x16x16xf32>,
    return
  }
  func.func @transform_0(%arg0: i32, %arg1: i32) -> (i32, i32, i32) {
    %c0_i32 = arith.constant 0 : i32
    %c0_i32_0 = arith.constant 0 : i32
    return %arg0, %c0_i32, %arg1 : i32, i32, i32
  }
  func.func @transform_1(%arg0: i32, %arg1: i32) -> (i32, i32, i32) {
    %c0_i32 = arith.constant 0 : i32
    %c0_i32_0 = arith.constant 0 : i32
    return %arg0, %c0_i32, %arg1 : i32, i32, i32
  }
  func.func @transform_2(%arg0: i32, %arg1: i32) -> (i32, i32, i32) {
    %c0_i32 = arith.constant 0 : i32
    %c0_i32_0 = arith.constant 0 : i32
    %c0_i32_1 = arith.constant 0 : i32
    return %arg0, %c0_i32, %c0_i32_0 : i32, i32, i32
  }
  func.func @transform_3(%arg0: i32, %arg1: i32) -> (i32, i32, i32) {
    %c0_i32 = arith.constant 0 : i32
    %c0_i32_0 = arith.constant 0 : i32
    return %arg0, %c0_i32, %arg1 : i32, i32, i32
  }
  func.func @transform_4(%arg0: i32, %arg1: i32) -> (i32, i32) {
    %c0_i32 = arith.constant 0 : i32
    %c0_i32_0 = arith.constant 0 : i32
    %c0_i32_1 = arith.constant 0 : i32
    return %c0_i32, %c0_i32_0 : i32, i32
  }
  func.func @transform_5(%arg0: i32, %arg1: i32) -> (i32, i32) {
    %c0_i32 = arith.constant 0 : i32
    %c0_i32_0 = arith.constant 0 : i32
    %c0_i32_1 = arith.constant 0 : i32
    return %c0_i32, %c0_i32_0 : i32, i32
  }
  func.func @transform_6(%arg0: i32, %arg1: i32) -> (i32, i32, i32) {
    %c0_i32 = arith.constant 0 : i32
    %c0_i32_0 = arith.constant 0 : i32
    return %arg0, %c0_i32, %arg1 : i32, i32, i32
  }
}

</mosaic_0001>

<llo_original>
// kernel: graph_attention_forward.1
$region0: #{graph_attention_forward.1}
  #allocation0 [shape = 'u32[]', space=smem, size = 0x4, offset = 0x4, fixed_abs, tag = 'smem constant byte address 0x4 - core index']
  #allocation1 [shape = 'u32[72,128]{1,0:T(1,128)}', space=vmem, size = 0x9000, scoped, tag = 'internal scratch']
  %s0 = inlined_call_operand.vmem [shape: s32[2,1,128], index: 0, kind: input, shape index: {}]
  %s1 = inlined_call_operand.vmem [shape: f32[2,16,16], index: 1, kind: input, shape index: {}]
  %s2 = inlined_call_operand.vmem [shape: f32[2,16,16], index: 2, kind: input, shape index: {}]
  %s3 = inlined_call_operand.vmem [shape: f32[2,16,128], index: 3, kind: input, shape index: {}]
  %s4 = inlined_call_operand.vmem [shape: f32[16,128], index: 4, kind: input, shape index: {}]
  %s5 = inlined_call_operand.vmem [shape: f32[128,16], index: 5, kind: input, shape index: {}]
  %s6 = inlined_call_operand.hbm [shape: f32[2,16,16], index: 6, kind: output, shape index: {}]
  %s7 = sld [smem:[#allocation0]]
  $region57: #{graph_attention_forward.1} parent=0
    _
  %s9 = ssub.s32 1, %s7
  %s10 = scalar_select 0, %s9, %s7
  $region1: #{graph_attention_forward.1} parent=0
    #allocation2 [shape = 'u8[16384]{0}', space=vmem, size = 0x4000, scoped, tag = 'output window, operand 0']
    #allocation3 [shape = 's32[2]{0}', space=sflag, size = 0x8, scoped, tag = 'scoped memory for graph_attention_forward.1']
    %11 = vsyncpa [#allocation3], 0
    %s12 = scalar_lea.sflag [#allocation3], 1
    %13 = vsyncpa %s12, 0
    loop: start=0, step=1, limit=4
    $region2: #{graph_attention_forward.1} parent=1 // loop_pre_header
      _
    $region3: #{graph_attention_forward.1} parent=1 // loop_header
      %s15 = sphi 0, %s19
      %p16 = scmp.ge.s32.totalorder %s15, 4
      %s22 = sphi 0, %s34
      %s23 = sphi 0, %s30
      %s24 = sphi 0, %s22
      %s25 = sphi 0, %s23
      %s26 = sphi 0, %s24
      %s27 = sphi 0, %s25
      %s39 = sphi 0, %s41
      %s42 = sphi 0, %s39
      %s43 = sphi 0, %s42
      %s59 = sphi 0, %s43
      %s67 = sphi 0, %s69
      %s70 = sphi 0, %s67
      %s71 = sphi 0, %s70
      %s87 = sphi 0, %s71
      %s93 = sphi 0, %s95
      %s96 = sphi 0, %s93
      %s97 = sphi 0, %s96
      %s113 = sphi 0, %s97
      %s121 = sphi 0, %s123
      %s124 = sphi 0, %s121
      %s125 = sphi 0, %s124
      %s141 = sphi 0, %s125
      %s145 = sphi 0, %s145
      %s147 = sphi 0, %s145
      %s148 = sphi 0, %s147
      %s162 = sphi 0, %s148
      %s166 = sphi 0, %s166
      %s168 = sphi 0, %s166
      %s169 = sphi 0, %s168
      %s183 = sphi 0, %s169
      %s191 = sphi 0, %s193
      %s194 = sphi 0, %s191
      %s195 = sphi 0, %s194
      %s211 = sphi 0, %s195
    $region4: #{graph_attention_forward.1} parent=1 // loop_header_branch
      %18 = sbr.rel (%p16) target = $region8
    $region5: #{graph_attention_forward.1} parent=1 // loop_body
      %s20 = ssub.s32 %s15, 1
      %s21 = ssub.s32 %s15, 2
      %s28 = sadd.s32 1, %s23
      %p29 = scmp.ge.s32.totalorder %s28, 1
      %s30 = scalar_select %p29, 0, %s28
      %s31 = sadd.s32 1, %s22
      %s32 = scalar_select %p29, %s31, %s22
      %p33 = scmp.ge.s32.totalorder %s32, 2
      %s34 = scalar_select %p33, 0, %s32
      %s35 = ssub.s32 %s22, %s34
      %s36 = ssub.s32 %s23, %s30
      %s37 = sor.u32 %s35, %s36
      %p38 = scmp.eq.s32.totalorder %s37, 0
      %s40 = sadd.s32 %s39, 1
      %s41 = scalar_select %p38, %s39, %s40
      %p44 = pneg %p38
      %p45 = scmp.eq.s32.totalorder %s15, 1
      %p46 = por %p44, %p45
      %p47 = scmp.ne.s32.totalorder %s39, %s42
      %p48 = scmp.eq.s32.totalorder %s15, 0
      %p49 = por %p47, %p48
      %p50 = scmp.ne.s32.totalorder %s39, %s42
      %p51 = scmp.eq.s32.totalorder %s20, 1
      %p52 = por %p50, %p51
      %p53 = scmp.ne.s32.totalorder %s42, %s43
      %p54 = scmp.eq.s32.totalorder %s20, 0
      %p55 = por %p53, %p54
      %p56 = scmp.ne.s32.totalorder %s42, %s43
      %p57 = scmp.eq.s32.totalorder %s21, 1
      %p58 = por %p56, %p57
      %p60 = scmp.ne.s32.totalorder %s43, %s59
      %p61 = scmp.eq.s32.totalorder %s21, 0
      %p62 = por %p60, %p61
      %s63 = ssub.s32 %s22, %s34
      %s64 = ssub.s32 %s23, %s30
      %s65 = sor.u32 %s63, %s64
      %p66 = scmp.eq.s32.totalorder %s65, 0
      %s68 = sadd.s32 %s67, 1
      %s69 = scalar_select %p66, %s67, %s68
      %p72 = pneg %p66
      %p73 = scmp.eq.s32.totalorder %s15, 1
      %p74 = por %p72, %p73
      %p75 = scmp.ne.s32.totalorder %s67, %s70
      %p76 = scmp.eq.s32.totalorder %s15, 0
      %p77 = por %p75, %p76
      %p78 = scmp.ne.s32.totalorder %s67, %s70
      %p79 = scmp.eq.s32.totalorder %s20, 1
      %p80 = por %p78, %p79
      %p81 = scmp.ne.s32.totalorder %s70, %s71
      %p82 = scmp.eq.s32.totalorder %s20, 0
      %p83 = por %p81, %p82
      %p84 = scmp.ne.s32.totalorder %s70, %s71
      %p85 = scmp.eq.s32.totalorder %s21, 1
      %p86 = por %p84, %p85
      %p88 = scmp.ne.s32.totalorder %s71, %s87
      %p89 = scmp.eq.s32.totalorder %s21, 0
      %p90 = por %p88, %p89
      %s91 = ssub.s32 %s22, %s34
      %p92 = scmp.eq.s32.totalorder %s91, 0
      %s94 = sadd.s32 %s93, 1
      %s95 = scalar_select %p92, %s93, %s94
      %p98 = pneg %p92
      %p99 = scmp.eq.s32.totalorder %s15, 1
      %p100 = por %p98, %p99
      %p101 = scmp.ne.s32.totalorder %s93, %s96
      %p102 = scmp.eq.s32.totalorder %s15, 0
      %p103 = por %p101, %p102
      %p104 = scmp.ne.s32.totalorder %s93, %s96
      %p105 = scmp.eq.s32.totalorder %s20, 1
      %p106 = por %p104, %p105
      %p107 = scmp.ne.s32.totalorder %s96, %s97
      %p108 = scmp.eq.s32.totalorder %s20, 0
      %p109 = por %p107, %p108
      %p110 = scmp.ne.s32.totalorder %s96, %s97
      %p111 = scmp.eq.s32.totalorder %s21, 1
      %p112 = por %p110, %p111
      %p114 = scmp.ne.s32.totalorder %s97, %s113
      %p115 = scmp.eq.s32.totalorder %s21, 0
      %p116 = por %p114, %p115
      %s117 = ssub.s32 %s22, %s34
      %s118 = ssub.s32 %s23, %s30
      %s119 = sor.u32 %s117, %s118
      %p120 = scmp.eq.s32.totalorder %s119, 0
      %s122 = sadd.s32 %s121, 1
      %s123 = scalar_select %p120, %s121, %s122
      %p126 = pneg %p120
      %p127 = scmp.eq.s32.totalorder %s15, 1
      %p128 = por %p126, %p127
      %p129 = scmp.ne.s32.totalorder %s121, %s124
      %p130 = scmp.eq.s32.totalorder %s15, 0
      %p131 = por %p129, %p130
      %p132 = scmp.ne.s32.totalorder %s121, %s124
      %p133 = scmp.eq.s32.totalorder %s20, 1
      %p134 = por %p132, %p133
      %p135 = scmp.ne.s32.totalorder %s124, %s125
      %p136 = scmp.eq.s32.totalorder %s20, 0
      %p137 = por %p135, %p136
      %p138 = scmp.ne.s32.totalorder %s124, %s125
      %p139 = scmp.eq.s32.totalorder %s21, 1
      %p140 = por %p138, %p139
      %p142 = scmp.ne.s32.totalorder %s125, %s141
      %p143 = scmp.eq.s32.totalorder %s21, 0
      %p144 = por %p142, %p143
      %s146 = sadd.s32 %s145, 1
      %p149 = scmp.eq.s32.totalorder %s15, 1
      %p150 = scmp.ne.s32.totalorder %s145, %s147
      %p151 = scmp.eq.s32.totalorder %s15, 0
      %p152 = por %p150, %p151
      %p153 = scmp.ne.s32.totalorder %s145, %s147
      %p154 = scmp.eq.s32.totalorder %s20, 1
      %p155 = por %p153, %p154
      %p156 = scmp.ne.s32.totalorder %s147, %s148
      %p157 = scmp.eq.s32.totalorder %s20, 0
      %p158 = por %p156, %p157
      %p159 = scmp.ne.s32.totalorder %s147, %s148
      %p160 = scmp.eq.s32.totalorder %s21, 1
      %p161 = por %p159, %p160
      %p163 = scmp.ne.s32.totalorder %s148, %s162
      %p164 = scmp.eq.s32.totalorder %s21, 0
      %p165 = por %p163, %p164
      %s167 = sadd.s32 %s166, 1
      %p170 = scmp.eq.s32.totalorder %s15, 1
      %p171 = scmp.ne.s32.totalorder %s166, %s168
      %p172 = scmp.eq.s32.totalorder %s15, 0
      %p173 = por %p171, %p172
      %p174 = scmp.ne.s32.totalorder %s166, %s168
      %p175 = scmp.eq.s32.totalorder %s20, 1
      %p176 = por %p174, %p175
      %p177 = scmp.ne.s32.totalorder %s168, %s169
      %p178 = scmp.eq.s32.totalorder %s20, 0
      %p179 = por %p177, %p178
      %p180 = scmp.ne.s32.totalorder %s168, %s169
      %p181 = scmp.eq.s32.totalorder %s21, 1
      %p182 = por %p180, %p181
      %p184 = scmp.ne.s32.totalorder %s169, %s183
      %p185 = scmp.eq.s32.totalorder %s21, 0
      %p186 = por %p184, %p185
      %s187 = ssub.s32 %s22, %s34
      %s188 = ssub.s32 %s23, %s30
      %s189 = sor.u32 %s187, %s188
      %p190 = scmp.eq.s32.totalorder %s189, 0
      %s192 = sadd.s32 %s191, 1
      %s193 = scalar_select %p190, %s191, %s192
      %p196 = pneg %p190
      %p197 = scmp.eq.s32.totalorder %s15, 1
      %p198 = por %p196, %p197
      %p199 = scmp.ne.s32.totalorder %s191, %s194
      %p200 = scmp.eq.s32.totalorder %s15, 0
      %p201 = por %p199, %p200
      %p202 = scmp.ne.s32.totalorder %s191, %s194
      %p203 = scmp.eq.s32.totalorder %s20, 1
      %p204 = por %p202, %p203
      %p205 = scmp.ne.s32.totalorder %s194, %s195
      %p206 = scmp.eq.s32.totalorder %s20, 0
      %p207 = por %p205, %p206
      %p208 = scmp.ne.s32.totalorder %s194, %s195
      %p209 = scmp.eq.s32.totalorder %s21, 1
      %p210 = por %p208, %p209
      %p212 = scmp.ne.s32.totalorder %s195, %s211
      %p213 = scmp.eq.s32.totalorder %s21, 0
      %p214 = por %p212, %p213
      %p215 = scmp.le.s32.totalorder 1, %s15
      %p216 = scmp.lt.s32.totalorder %s15, 3
      %p217 = pnand %p215, %p216
      %p218 = pneg %p217
      // Predicated region
      $region9: #{graph_attention_forward.1} parent=5 // pred_check
        _
      $region10: #{graph_attention_forward.1} parent=5 // pred_check_branch
        %220 = sbr.rel (%p217) target = $region12
      $region11: #{graph_attention_forward.1} parent=5 // pred_region
        %s221 = ssub.s32 %s15, 1
        // Predicated region
        $region13: #{graph_attention_forward.1} parent=11 // pred_check
          %p222 = pneg %p158
        $region14: #{graph_attention_forward.1} parent=11 // pred_check_branch
          %224 = sbr.rel (%p222) target = $region16
        $region15: #{graph_attention_forward.1} parent=11 // pred_region
          _
        $region16: #{graph_attention_forward.1} parent=11 // pred_fallthru
          _
        // Predicated region
        $region17: #{graph_attention_forward.1} parent=11 // pred_check
          %p225 = pneg %p179
        $region18: #{graph_attention_forward.1} parent=11 // pred_check_branch
          %227 = sbr.rel (%p225) target = $region20
        $region19: #{graph_attention_forward.1} parent=11 // pred_region
          _
        $region20: #{graph_attention_forward.1} parent=11 // pred_fallthru
          _
      $region12: #{graph_attention_forward.1} parent=5 // pred_fallthru
        _
      %p228 = scmp.lt.s32.totalorder %s15, 2
      // Predicated region
      $region21: #{graph_attention_forward.1} parent=5 // pred_check
        %p229 = pneg %p228
      $region22: #{graph_attention_forward.1} parent=5 // pred_check_branch
        %231 = sbr.rel (%p229) target = $region24
      $region23: #{graph_attention_forward.1} parent=5 // pred_region
        // Predicated region
        $region25: #{graph_attention_forward.1} parent=23 // pred_check
          %p232 = pneg %p49
        $region26: #{graph_attention_forward.1} parent=23 // pred_check_branch
          %234 = sbr.rel (%p232) target = $region28
        $region27: #{graph_attention_forward.1} parent=23 // pred_region
          %p235 = scmp.lt.s32.totalorder %s22, 1
          %s236 = scalar_select %p235, %s22, 1
          %p237 = scmp.lt.s32.totalorder %s23, 0
          %s238 = scalar_select %p237, %s23, 0
          %s239 = sadd.s32 %s238, %s236
          %s240 = scalar_lea.vmem %s0, %s239
        $region28: #{graph_attention_forward.1} parent=23 // pred_fallthru
          _
        // Predicated region
        $region29: #{graph_attention_forward.1} parent=23 // pred_check
          %p241 = pneg %p77
        $region30: #{graph_attention_forward.1} parent=23 // pred_check_branch
          %243 = sbr.rel (%p241) target = $region32
        $region31: #{graph_attention_forward.1} parent=23 // pred_region
          %p244 = scmp.lt.s32.totalorder %s22, 1
          %s245 = scalar_select %p244, %s22, 1
          %p246 = scmp.lt.s32.totalorder %s23, 0
          %s247 = scalar_select %p246, %s23, 0
          %s248 = smul.addr %s245, 2
          %s249 = sadd.s32 %s247, %s248
          %s250 = smul.addr %s249, 8
          %s251 = scalar_lea.vmem %s1, %s250
        $region32: #{graph_attention_forward.1} parent=23 // pred_fallthru
          _
        // Predicated region
        $region33: #{graph_attention_forward.1} parent=23 // pred_check
          %p252 = pneg %p103
        $region34: #{graph_attention_forward.1} parent=23 // pred_check_branch
          %254 = sbr.rel (%p252) target = $region36
        $region35: #{graph_attention_forward.1} parent=23 // pred_region
          %p255 = scmp.lt.s32.totalorder %s22, 1
          %s256 = scalar_select %p255, %s22, 1
          %s257 = smul.addr %s256, 2
          %s258 = smul.addr %s257, 8
          %s259 = scalar_lea.vmem %s2, %s258
        $region36: #{graph_attention_forward.1} parent=23 // pred_fallthru
          _
        // Predicated region
        $region37: #{graph_attention_forward.1} parent=23 // pred_check
          %p260 = pneg %p131
        $region38: #{graph_attention_forward.1} parent=23 // pred_check_branch
          %262 = sbr.rel (%p260) target = $region40
        $region39: #{graph_attention_forward.1} parent=23 // pred_region
          %p263 = scmp.lt.s32.totalorder %s22, 1
          %s264 = scalar_select %p263, %s22, 1
          %p265 = scmp.lt.s32.totalorder %s23, 0
          %s266 = scalar_select %p265, %s23, 0
          %s267 = smul.addr %s264, 2
          %s268 = sadd.s32 %s266, %s267
          %s269 = smul.addr %s268, 8
          %s270 = scalar_lea.vmem %s3, %s269
        $region40: #{graph_attention_forward.1} parent=23 // pred_fallthru
          _
      $region24: #{graph_attention_forward.1} parent=5 // pred_fallthru
        _
      %p271 = scmp.le.s32.totalorder 1, %s15
      %p272 = scmp.lt.s32.totalorder %s15, 3
      %p273 = pnand %p271, %p272
      %p274 = pneg %p273
      // Predicated region
      $region41: #{graph_attention_forward.1} parent=5 // pred_check
        _
      $region42: #{graph_attention_forward.1} parent=5 // pred_check_branch
        %276 = sbr.rel (%p273) target = $region44
      $region43: #{graph_attention_forward.1} parent=5 // pred_region
        %s277 = ssub.s32 %s15, 1
        %p278 = scmp.lt.s32.totalorder %s24, 1
        %s279 = scalar_select %p278, %s24, 1
        %p280 = scmp.lt.s32.totalorder %s25, 0
        %s281 = scalar_select %p280, %s25, 0
        %s282 = sadd.s32 %s281, %s279
        %s283 = scalar_lea.vmem %s0, %s282
        %p284 = pneg %p55
        %p285 = pneg %p52
        %p286 = scmp.lt.s32.totalorder %s24, 1
        %s287 = scalar_select %p286, %s24, 1
        %p288 = scmp.lt.s32.totalorder %s25, 0
        %s289 = scalar_select %p288, %s25, 0
        %s290 = smul.addr %s287, 2
        %s291 = sadd.s32 %s289, %s290
        %s292 = smul.addr %s291, 8
        %s293 = scalar_lea.vmem %s1, %s292
        %p294 = pneg %p83
        %p295 = pneg %p80
        %p296 = scmp.lt.s32.totalorder %s24, 1
        %s297 = scalar_select %p296, %s24, 1
        %s298 = smul.addr %s297, 2
        %s299 = smul.addr %s298, 8
        %s300 = scalar_lea.vmem %s2, %s299
        %p301 = pneg %p109
        %p302 = pneg %p106
        %p303 = scmp.lt.s32.totalorder %s24, 1
        %s304 = scalar_select %p303, %s24, 1
        %p305 = scmp.lt.s32.totalorder %s25, 0
        %s306 = scalar_select %p305, %s25, 0
        %s307 = smul.addr %s304, 2
        %s308 = sadd.s32 %s306, %s307
        %s309 = smul.addr %s308, 8
        %s310 = scalar_lea.vmem %s3, %s309
        %p311 = pneg %p137
        %p312 = pneg %p134
        %p313 = pneg %p158
        %p314 = pneg %p155
        %p315 = pneg %p179
        %p316 = pneg %p176
        %p317 = pneg %p207
        %p318 = pneg %p204
        %s319 = sand.u32 %s194, 1
        %s320 = scalar_lea.sflag [#allocation3], %s319
        %s321 = sand.u32 %s194, 1
        %s322 = smul.addr %s321, 16
        %s323 = scalar_lea.vmem [#allocation2], %s322
        %p324 = scmp.lt.s32.totalorder %s24, 1
        %s325 = scalar_select %p324, %s24, 1
        %p326 = scmp.lt.s32.totalorder %s25, 0
        %s327 = scalar_select %p326, %s25, 0
        %s328 = sadd.s32 %s327, %s325
        %s329 = scalar_lea.vmem %s0, %s328
        %p330 = scmp.lt.s32.totalorder %s24, 1
        %s331 = scalar_select %p330, %s24, 1
        %p332 = scmp.lt.s32.totalorder %s25, 0
        %s333 = scalar_select %p332, %s25, 0
        %s334 = smul.addr %s331, 2
        %s335 = sadd.s32 %s333, %s334
        %s336 = smul.addr %s335, 8
        %s337 = scalar_lea.vmem %s1, %s336
        %p338 = scmp.lt.s32.totalorder %s24, 1
        %s339 = scalar_select %p338, %s24, 1
        %s340 = smul.addr %s339, 2
        %s341 = smul.addr %s340, 8
        %s342 = scalar_lea.vmem %s2, %s341
        %p343 = scmp.lt.s32.totalorder %s24, 1
        %s344 = scalar_select %p343, %s24, 1
        %p345 = scmp.lt.s32.totalorder %s25, 0
        %s346 = scalar_select %p345, %s25, 0
        %s347 = smul.addr %s344, 2
        %s348 = sadd.s32 %s346, %s347
        %s349 = smul.addr %s348, 8
        %s350 = scalar_lea.vmem %s3, %s349
        %v351 = vld [vmem:[%s329] sm:$0x1]
        %v352 = vld [vmem:[%s4] sm:$0xff]
        %v353 = vld [vmem:[%s4 + $0x8] sm:$0xff]
        %v354 = vld [vmem:[%s5] sm:$0xff]
        %v355 = vld [vmem:[%s5 + $0x8] sm:$0xff]
        %v356 = vld [vmem:[%s5 + $0x10] sm:$0xff]
        %v357 = vld [vmem:[%s5 + $0x18] sm:$0xff]
        %v358 = vld [vmem:[%s5 + $0x20] sm:$0xff]
        %v359 = vld [vmem:[%s5 + $0x28] sm:$0xff]
        %v360 = vld [vmem:[%s5 + $0x30] sm:$0xff]
        %v361 = vld [vmem:[%s5 + $0x38] sm:$0xff]
        %v362 = vld [vmem:[%s5 + $0x40] sm:$0xff]
        %v363 = vld [vmem:[%s5 + $0x48] sm:$0xff]
        %v364 = vld [vmem:[%s5 + $0x50] sm:$0xff]
        %v365 = vld [vmem:[%s5 + $0x58] sm:$0xff]
        %v366 = vld [vmem:[%s5 + $0x60] sm:$0xff]
        %v367 = vld [vmem:[%s5 + $0x68] sm:$0xff]
        %v368 = vld [vmem:[%s5 + $0x70] sm:$0xff]
        %v369 = vld [vmem:[%s5 + $0x78] sm:$0xff]
        %v370 = vlaneseq
        %v371 = vshrl.u32 %v370, 7
        %v372 = vadd.s32 %v371, 8
        %v373 = vperm.slane %v351, 0
        %vm374 = vcmp.eq.s32.totalorder %v371, %v373
        %vm375 = vcmp.eq.s32.totalorder %v372, %v373
        %v376 = vsel %vm374, 1, 0
        %v377 = vsel %vm375, 1, 0
        %v378 = vcvt.s32.f32 %v376
        %v379 = vcvt.s32.f32 %v377
        %v380 = vld [vmem:[%s342] sm:$0xff]
        %v381 = vld [vmem:[%s342 + $0x8] sm:$0xff]
        %v382 = vld [vmem:[%s337] sm:$0xff]
        %v383 = vld [vmem:[%s337 + $0x8] sm:$0xff]
        %vm384 = vcmask 130048
        %v386 = vsel %vm384, %v382, 0
        %v389 = vsel %vm384, %v383, 0
        %391 = vmatpush.msra.mxu0 0.0
        %392 = vmatpush.msra.mxu0 0.0
        %393 = vmatpush.msra.mxu0 0.0
        %394 = vmatpush.msra.mxu0 0.0
        %395 = vmatpush.msra.mxu0 0.0
        %396 = vmatpush.msra.mxu0 0.0
        %397 = vmatpush.msra.mxu0 0.0
        %398 = vmatpush.msra.mxu0 0.0
        %399 = vmatpush.msra.mxu0 0.0
        %400 = vmatpush.msra.mxu0 0.0
        %401 = vmatpush.msra.mxu0 0.0
        %402 = vmatpush.msra.mxu0 0.0
        %403 = vmatpush.msra.mxu0 0.0
        %404 = vmatpush.msra.mxu0 0.0
        %405 = vmatpush.msra.mxu0 %v353
        %406 = vmatpush.msra.mxu0 %v352
        %407 = vmatmul.f32.gmra.mxu0 %v386
        %v408 = vpop.f32.mrf.mxu0
        %v409 = vadd.f32 0.0, %v408
        %410 = vmatmul.f32.gmra.mxu0 %v389
        %v411 = vpop.f32.mrf.mxu0
        %v412 = vadd.f32 0.0, %v411
        %413 = vdwg.mxu0
        %v415 = vsel %vm384, %v380, 0
        %v418 = vsel %vm384, %v381, 0
        %420 = vmatpush.msra.mxu0 0.0
        %421 = vmatpush.msra.mxu0 0.0
        %422 = vmatpush.msra.mxu0 0.0
        %423 = vmatpush.msra.mxu0 0.0
        %424 = vmatpush.msra.mxu0 0.0
        %425 = vmatpush.msra.mxu0 0.0
        %426 = vmatpush.msra.mxu0 0.0
        %427 = vmatpush.msra.mxu0 0.0
        %428 = vmatpush.msra.mxu0 0.0
        %429 = vmatpush.msra.mxu0 0.0
        %430 = vmatpush.msra.mxu0 0.0
        %431 = vmatpush.msra.mxu0 0.0
        %432 = vmatpush.msra.mxu0 0.0
        %433 = vmatpush.msra.mxu0 0.0
        %434 = vmatpush.msra.mxu0 %v379
        %435 = vmatpush.msra.mxu0 %v378
        %436 = vmatmul.f32.gmra.mxu0 %v415
        %v437 = vpop.f32.mrf.mxu0
        %v438 = vadd.f32 %v409, %v437
        %439 = vmatmul.f32.gmra.mxu0 %v418
        %v440 = vpop.f32.mrf.mxu0
        %v441 = vadd.f32 %v412, %v440
        %442 = vdwg.mxu0
        %vm443 = vcmp.ge.f32.partialorder %v438, 0.0
        %vm444 = vcmp.ge.f32.partialorder %v441, 0.0
        %v445 = vmul.f32 %v438, 0.2
        %v446 = vmul.f32 %v441, 0.2
        %v447 = vsel %vm443, %v438, %v445
        %v448 = vsel %vm444, %v441, %v446
        %449 = vmatpush.msra.mxu0 %v369
        %450 = vmatpush.msra.mxu0 %v368
        %451 = vmatpush.msra.mxu0 %v367
        %452 = vmatpush.msra.mxu0 %v366
        %453 = vmatpush.msra.mxu0 %v365
        %454 = vmatpush.msra.mxu0 %v364
        %455 = vmatpush.msra.mxu0 %v363
        %456 = vmatpush.msra.mxu0 %v362
        %457 = vmatpush.msra.mxu0 %v361
        %458 = vmatpush.msra.mxu0 %v360
        %459 = vmatpush.msra.mxu0 %v359
        %460 = vmatpush.msra.mxu0 %v358
        %461 = vmatpush.msra.mxu0 %v357
        %462 = vmatpush.msra.mxu0 %v356
        %463 = vmatpush.msra.mxu0 %v355
        %464 = vmatpush.msra.mxu0 %v354
        %465 = vmatmul.f32.gmra.mxu0 %v447
        %v466 = vpop.f32.mrf.mxu0
        %v467 = vadd.f32 0.0, %v466
        %468 = vmatmul.f32.gmra.mxu0 %v448
        %v469 = vpop.f32.mrf.mxu0
        %v470 = vadd.f32 0.0, %v469
        %471 = vdwg.mxu0
        %v472 = vmul.f32 %v467, 0.125
        %v473 = vmul.f32 %v470, 0.125
        %v475 = vsel %vm384, %v472, 0
        %v478 = vsel %vm384, %v473, 0
        %480 = vmatpush.msra.mxu0 0.0
        %481 = vmatpush.msra.mxu0 0.0
        %482 = vmatpush.msra.mxu0 0.0
        %483 = vmatpush.msra.mxu0 0.0
        %484 = vmatpush.msra.mxu0 0.0
        %485 = vmatpush.msra.mxu0 0.0
        %486 = vmatpush.msra.mxu0 0.0
        %487 = vmatpush.msra.mxu0 0.0
        %488 = vmatpush.msra.mxu0 0.0
        %489 = vmatpush.msra.mxu0 0.0
        %490 = vmatpush.msra.mxu0 0.0
        %491 = vmatpush.msra.mxu0 0.0
        %492 = vmatpush.msra.mxu0 0.0
        %493 = vmatpush.msra.mxu0 0.0
        %494 = vmatpush.msra.mxu0 %v353
        %495 = vmatpush.msra.mxu0 %v352
        %496 = vmatmul.f32.gmra.mxu0 %v475
        %v497 = vpop.f32.mrf.mxu0
        %v498 = vadd.f32 0.0, %v497
        %499 = vmatmul.f32.gmra.mxu0 %v478
        %v500 = vpop.f32.mrf.mxu0
        %v501 = vadd.f32 0.0, %v500
        %502 = vdwg.mxu0
        %v503 = vsub.f32 %v447, %v498
        %v504 = vsub.f32 %v448, %v501
        %v505 = vmul.f32 %v503, 1.442695
        %v506 = vpow.pop %v505
        %v507 = vmul.f32 %v504, 1.442695
        %v508 = vpow.pop %v507
        %v509 = vld [vmem:[%s350] sm:$0xff]
        %v510 = vld [vmem:[%s350 + $0x8] sm:$0xff]
        %v511 = vmul.f32 %v506, %v509
        %v512 = vmul.f32 %v508, %v510
        %513 = vmatpush.msra.mxu0 %v369
        %514 = vmatpush.msra.mxu0 %v368
        %515 = vmatpush.msra.mxu0 %v367
        %516 = vmatpush.msra.mxu0 %v366
        %517 = vmatpush.msra.mxu0 %v365
        %518 = vmatpush.msra.mxu0 %v364
        %519 = vmatpush.msra.mxu0 %v363
        %520 = vmatpush.msra.mxu0 %v362
        %521 = vmatpush.msra.mxu0 %v361
        %522 = vmatpush.msra.mxu0 %v360
        %523 = vmatpush.msra.mxu0 %v359
        %524 = vmatpush.msra.mxu0 %v358
        %525 = vmatpush.msra.mxu0 %v357
        %526 = vmatpush.msra.mxu0 %v356
        %527 = vmatpush.msra.mxu0 %v355
        %528 = vmatpush.msra.mxu0 %v354
        %529 = vmatmul.f32.gmra.mxu0 %v506
        %v530 = vpop.f32.mrf.mxu0
        %v531 = vadd.f32 0.0, %v530
        %532 = vmatmul.f32.gmra.mxu0 %v508
        %v533 = vpop.f32.mrf.mxu0
        %v534 = vadd.f32 0.0, %v533
        %535 = vmatmul.f32.gmra.mxu0 %v511
        %v536 = vpop.f32.mrf.mxu0
        %v537 = vadd.f32 0.0, %v536
        %538 = vmatmul.f32.gmra.mxu0 %v512
        %v539 = vpop.f32.mrf.mxu0
        %v540 = vadd.f32 0.0, %v539
        %541 = vdwg.mxu0
        %v542 = vrcp.pop %v531
        %v543 = vrcp.pop %v534
        %v544 = vmul.f32 %v537, %v542
        %v545 = vmul.f32 %v540, %v543
        %546 = vst.msk [vmem:[%s323] sm:$0xff] %vm384, %v544
        %547 = vst.msk [vmem:[%s323 + $0x8] sm:$0xff] %vm384, %v545
        %s548 = sand.u32 %s194, 1
        %s549 = scalar_lea.sflag [#allocation3], %s548
        %s550 = sand.u32 %s194, 1
        %s551 = smul.addr %s550, 16
        %s552 = scalar_lea.vmem [#allocation2], %s551
        // Predicated region
        $region45: #{graph_attention_forward.1} parent=43 // pred_check
          %p553 = pneg %p204
        $region46: #{graph_attention_forward.1} parent=43 // pred_check_branch
          %555 = sbr.rel (%p553) target = $region48
        $region47: #{graph_attention_forward.1} parent=43 // pred_region
          %557 = vsyncadd %s549, 0
          %s558 = smul.addr %s24, 2
          %s559 = sadd.s32 %s25, %s558
          %s560 = smul.addr %s559, 8
          %s561 = scalar_lea.hbm %s6, %s560
          %s562 = sshll.u32 %s552, 4
          %s563 = int_to_ptr.vmem [resolvable:$true] %s562
          %s564 = sshll.u32 %s561, 4
          %s565 = int_to_ptr.hbm [resolvable:$true] %s564
          %570 = dma.vmem_to_hbm [thread:$0]  %s563, 256, %s565, %s549, 128, 128, 8
        $region48: #{graph_attention_forward.1} parent=43 // pred_fallthru
          _
      $region44: #{graph_attention_forward.1} parent=5 // pred_fallthru
        _
      %p571 = scmp.le.s32.totalorder 2, %s15
      // Predicated region
      $region49: #{graph_attention_forward.1} parent=5 // pred_check
        %p572 = pneg %p571
      $region50: #{graph_attention_forward.1} parent=5 // pred_check_branch
        %574 = sbr.rel (%p572) target = $region52
      $region51: #{graph_attention_forward.1} parent=5 // pred_region
        %s575 = ssub.s32 %s15, 2
        // Predicated region
        $region53: #{graph_attention_forward.1} parent=51 // pred_check
          %p576 = pneg %p210
        $region54: #{graph_attention_forward.1} parent=51 // pred_check_branch
          %578 = sbr.rel (%p576) target = $region56
        $region55: #{graph_attention_forward.1} parent=51 // pred_region
          %s579 = sand.u32 %s195, 1
          %s580 = scalar_lea.sflag [#allocation3], %s579
          %s581 = sand.u32 %s195, 1
          %s582 = smul.addr %s581, 16
          %s583 = scalar_lea.vmem [#allocation2], %s582
          %585 = dma.done %s580, 256
        $region56: #{graph_attention_forward.1} parent=51 // pred_fallthru
          _
      $region52: #{graph_attention_forward.1} parent=5 // pred_fallthru
        _
    $region6: #{graph_attention_forward.1} parent=1 // loop_footer
      %s19 = sadd.s32 1, %s15
    $region7: #{graph_attention_forward.1} parent=1 // loop_footer_branch
      %14 = sbr.rel target = $region3
    $region8: #{graph_attention_forward.1} parent=1 // loop_exit
      _
    %586 = vsyncpa [#allocation3], 1
    %s587 = scalar_lea.sflag [#allocation3], 1
    %588 = vsyncpa %s587, 1

</llo_original>
